<compile_context>
chip_gen: v7x
topology: tpu7x:2x2x1
jax: 0.10.0
libtpu: 0.0.40
codegen_flags: <defaults>
</compile_context>

<pallas_src>
import functools

import jax
import jax.numpy as jnp
from jax.experimental import pallas as pl
from jax.experimental.pallas import tpu as pltpu


_LANE = 128
_CHUNK = 128                        # timesteps per in-kernel chunk (= dense store width)
_TARGET_TILE_BYTES = 4 * 1024 * 1024   # per-input-tile target (double-buffered by Pallas)
_MAX_TILE_ROWS = 4096               # cap on the time-tile extent (keeps unroll sane)


def _round_up(x: int, m: int) -> int:
    return (x + m - 1) // m * m


def _neg_fill(dtype):
    """Most-negative fill value for masking out-of-vocabulary lanes."""
    dtype = jnp.dtype(dtype)
    if jnp.issubdtype(dtype, jnp.floating):
        return jnp.array(-jnp.inf, dtype=dtype)
    return jnp.array(jnp.iinfo(dtype).min, dtype=dtype)


def _argmax_chunk_kernel(em_ref, idx_ref, *, num_labels: int, lanes: int, chunk: int):
    """Per-timestep argmax over labels for one time tile.

    em_ref:  (tt, lanes)  emission block; lanes = round_up(L, 128).  Lanes
             >= num_labels and rows past T hold DMA garbage (masked / discarded).
    idx_ref: (1, tt) int32, lane-dense argmax row.
    """
    rows = em_ref.shape[0]
    pad_lanes = lanes != num_labels
    neg = _neg_fill(em_ref.dtype)

    # Loop-invariant iotas, hoisted (JAX does not CSE broadcast_in_dim).
    lbl_col = jax.lax.broadcasted_iota(jnp.int32, (lanes, 1), 0)        # label id per sublane row
    if pad_lanes:
        lane_ids = jax.lax.broadcasted_iota(jnp.int32, (1, lanes), 1)   # lane id per column

    for c in range(rows // chunk):
        sub = em_ref[c * chunk:(c + 1) * chunk, :]                      # (chunk, lanes)
        if pad_lanes:
            # Garbage lanes must never win the max.
            sub = jnp.where(lane_ids < num_labels, sub, neg)
        # XLU transpose: labels -> sublanes, time -> lanes.  From here on the
        # reductions are dense sublane reductions and the result is lane-major.
        sub_t = jnp.transpose(sub)                                      # (lanes, chunk)
        mx = jnp.max(sub_t, axis=0, keepdims=True)                      # (1, chunk)
        # First-occurrence tie-break: smallest label among maximal entries.
        cand = jnp.where(sub_t == mx, lbl_col, jnp.int32(num_labels))   # (lanes, chunk)
        idx_ref[:, c * chunk:(c + 1) * chunk] = jnp.min(cand, axis=0, keepdims=True)


def _argmax_over_labels(emission: jax.Array) -> jax.Array:
    """Per-timestep argmax over labels.  emission: [T, L] -> int32 [T]."""
    T, L = emission.shape
    itemsize = jnp.dtype(emission.dtype).itemsize
    lanes = _round_up(L, _LANE)

    # --- time-tile sizing -------------------------------------------------
    t_ceil = _round_up(T, _CHUNK)
    tt = _TARGET_TILE_BYTES // (lanes * itemsize)
    tt = max(_CHUNK, min(_MAX_TILE_ROWS, (tt // _CHUNK) * _CHUNK))
    # Keep >= 2 grid steps when there is enough work so the "parallel" axis can
    # shard across both TensorCores on v7x (single step is fine on v5e/v6e).
    if t_ceil >= 2 * _CHUNK:
        tt = min(tt, _round_up(pl.cdiv(t_ceil, 2), _CHUNK))
    tt = min(tt, t_ceil)
    grid = pl.cdiv(T, tt)

    in_tile_bytes = tt * lanes * itemsize
    out_tile_bytes = tt * 4
    # 2x double-buffered input + output tiles, plus headroom for in-kernel
    # transpose/compare scratch.  Stays well under v7x's 64 MiB / v5e's 16 MiB.
    vmem_limit = int(min(96 * 2 ** 20,
                         max(16 * 2 ** 20,
                             4 * (in_tile_bytes + out_tile_bytes) + (4 << 20))))

    kernel = functools.partial(
        _argmax_chunk_kernel, num_labels=L, lanes=lanes, chunk=_CHUNK)

    idx_row = pl.pallas_call(
        kernel,
        out_shape=jax.ShapeDtypeStruct((1, grid * tt), jnp.int32),
        grid=(grid,),
        in_specs=[pl.BlockSpec((tt, lanes), lambda i: (i, 0))],
        out_specs=pl.BlockSpec((1, tt), lambda i: (0, i)),
        compiler_params=pltpu.CompilerParams(
            dimension_semantics=("parallel",),
            vmem_limit_bytes=vmem_limit),
    )(emission)

    # Positions >= T correspond to DMA-garbage rows; discard them here.
    return idx_row[0, :T]


@functools.partial(jax.jit, static_argnames=("blank",))
def greedy_ctc_marked_indices(emission: jax.Array, blank: int = 0) -> jax.Array:
    """Fixed-shape device result: int32 [T] with kept indices, -1 where dropped.

    Position t is kept iff it survives unique_consecutive + blank filtering.
    """
    idx = _argmax_over_labels(emission)
    # unique_consecutive + blank filter on the tiny length-T vector (wrapper
    # side: removes the cross-tile idx[t-1] carry, lets the kernel tile T).
    changed = jnp.concatenate([jnp.ones((1,), dtype=bool), idx[1:] != idx[:-1]])
    keep = changed & (idx != jnp.int32(blank))
    # Single packed output -> one host transfer in the decode path.
    return jnp.where(keep, idx, jnp.int32(-1))


def greedy_ctc_decode_to_list(emission: jax.Array, blank: int = 0):
    """Host-side glue: the variable-length transcript index list (ragged)."""
    # TODO(synk): the ragged List output has no fixed-shape TPU representation;
    # the final compaction stays on the host.
    marked = jax.device_get(greedy_ctc_marked_indices(emission, blank=blank))
    return [int(i) for i in marked if i >= 0]


def _reference_decode(emission, blank=0):
    """Pure numpy reference mirroring the PyTorch forward."""
    import numpy as np
    em = jax.device_get(emission)
    indices = np.argmax(em, axis=-1)
    out = []
    prev = None
    for v in indices:
        if prev is None or v != prev:
            out.append(int(v))
        prev = v
    return [i for i in out if i != blank]


if __name__ == "__main__":
    key = jax.random.PRNGKey(0)
    k1, k2, k3 = jax.random.split(key, 3)

    # Small shape consistent with the module: [num_seq=16, num_label=32].
    T, L = 16, 32
    emission = jax.random.normal(k1, (T, L), dtype=jnp.float32)
    # Inject deterministic repeats / blanks so unique_consecutive and blank
    # filtering actually do something.
    emission = emission.at[3, :].set(emission[2, :])   # repeat of step 2
    emission = emission.at[5, 0].set(100.0)            # force blank at t=5
    emission = emission.at[6, 0].set(100.0)            # force blank at t=6

    marked = greedy_ctc_marked_indices(emission, blank=0)
    jax.block_until_ready(marked)

    result = greedy_ctc_decode_to_list(emission, blank=0)
    expected = _reference_decode(emission, blank=0)
    assert result == expected, f"mismatch: {result} vs {expected}"

    # Lane-aligned vocabulary (no in-kernel lane masking path).
    em2 = jax.random.normal(k2, (40, 256), dtype=jnp.float32)
    r2 = greedy_ctc_decode_to_list(em2, blank=0)
    e2 = _reference_decode(em2, blank=0)
    assert r2 == e2, f"mismatch (L=256): {r2} vs {e2}"

    # Longer ragged sequence: >=2 grid steps plus garbage-row / garbage-lane
    # handling of the final partial block.
    em3 = jax.random.normal(k3, (300, 33), dtype=jnp.float32)
    r3 = greedy_ctc_decode_to_list(em3, blank=0)
    e3 = _reference_decode(em3, blank=0)
    assert r3 == e3, f"mismatch (ragged T): {r3} vs {e3}"

    print("KERNEL_OK")
</pallas_src>

<mosaic_0001>
module attributes {stable_mosaic.version = 11 : i64} {
  func.func @_argmax_chunk_kernel(%arg0: i32, %arg1: memref<128x128xf32, #tpu.memory_space<vmem>>, %arg2: memref<1x128xi32, #tpu.memory_space<vmem>>) attributes {dimension_semantics = [#tpu.dimension_semantics<parallel>], iteration_bounds = array<i64: 1>, scalar_prefetch = 0 : i64, scratch_operands = 0 : i64, tpu.core_type = #tpu.core_type<tc>, window_params = [{transform_indices = @transform_0, window_bounds = array<i64: 128, 128>}, {transform_indices = @transform_1, window_bounds = array<i64: 1, 128>}]} {
    %0 = tpu.iota {dimensions = array<i32: 0>} : vector<128x1xi32>
    %1 = tpu.iota {dimensions = array<i32: 1>} : vector<1x128xi32>
    %c0 = arith.constant 0 : index
    %c0_0 = arith.constant 0 : index
    %2 = vector.load %arg1[%c0, %c0_0] : memref<128x128xf32, #tpu.memory_space<vmem>>, vector<128x128xf32>
    %c32_i32 = arith.constant 32 : i32
    %3 = vector.broadcast %c32_i32 : i32 to vector<1x128xi32>
    %4 = arith.cmpi slt, %1, %3 : vector<1x128xi32>
    %cst = arith.constant 0xFF800000 : f32
    %5 = vector.shape_cast %4 : vector<1x128xi1> to vector<1x128xi1>
    %6 = vector.broadcast %5 : vector<1x128xi1> to vector<128x128xi1>
    %7 = vector.broadcast %cst : f32 to vector<128x128xf32>
    %8 = arith.select %6, %2, %7 : vector<128x128xi1>, vector<128x128xf32>
    %9 = tpu.transpose %8, [1, 0] : vector<128x128xf32> -> vector<128x128xf32>
    %cst_1 = arith.constant dense<0xFF800000> : vector<128xf32>
    %10 = vector.multi_reduction <maximumf>, %9, %cst_1 [0] : vector<128x128xf32> to vector<128xf32>
    %11 = vector.shape_cast %10 : vector<128xf32> to vector<1x128xf32>
    %12 = vector.broadcast %11 : vector<1x128xf32> to vector<128x128xf32>
    %13 = arith.cmpf oeq, %9, %12 : vector<128x128xf32>
    %c32_i32_2 = arith.constant 32 : i32
    %14 = vector.shape_cast %0 : vector<128x1xi32> to vector<128x1xi32>
    %15 = vector.broadcast %14 : vector<128x1xi32> to vector<128x128xi32>
    %16 = vector.broadcast %c32_i32_2 : i32 to vector<128x128xi32>
    %17 = arith.select %13, %15, %16 : vector<128x128xi1>, vector<128x128xi32>
    %cst_3 = arith.constant dense<2147483647> : vector<128xi32>
    %18 = vector.multi_reduction <minsi>, %17, %cst_3 [0] : vector<128x128xi32> to vector<128xi32>
    %19 = vector.shape_cast %18 : vector<128xi32> to vector<1x128xi32>
    %c0_4 = arith.constant 0 : index
    %c0_5 = arith.constant 0 : index
    %20 = vector.load %arg2[%c0_4, %c0_5] : memref<1x128xi32, #tpu.memory_space<vmem>>, vector<1x128xi32>
    tpu.vector_store %arg2[%c0_4, %c0_5], %19 {strides = array<i32>} : memref<1x128xi32, #tpu.memory_space<vmem>>, vector<1x128xi32>,
    return
  }
  func.func @transform_0(%arg0: i32) -> (i32, i32) {
    %c0_i32 = arith.constant 0 : i32
    %c0_i32_0 = arith.constant 0 : i32
    return %arg0, %c0_i32 : i32, i32
  }
  func.func @transform_1(%arg0: i32) -> (i32, i32) {
    %c0_i32 = arith.constant 0 : i32
    %c0_i32_0 = arith.constant 0 : i32
    return %c0_i32, %arg0 : i32, i32
  }
}

</mosaic_0001>

<llo_original>
// kernel: greedy_ctc_marked_indices.1
$region0: #{greedy_ctc_marked_indices.1}
  #allocation0 [shape = 'u32[]', space=smem, size = 0x4, offset = 0x4, fixed_abs, tag = 'smem constant byte address 0x4 - core index']
  #allocation1 [shape = 'u32[144,128]{1,0:T(1,128)}', space=vmem, size = 0x12000, scoped, tag = 'internal scratch']
  %s0 = inlined_call_operand.hbm [shape: f32[16,32], index: 0, kind: input, shape index: {}]
  %s1 = inlined_call_operand.vmem [shape: s32[1,128], index: 1, kind: output, shape index: {}]
  %s2 = sld [smem:[#allocation0]]
  $region18: #{greedy_ctc_marked_indices.1} parent=0
    _
  %s4 = ssub.s32 1, %s2
  %s5 = scalar_select 0, %s4, %s2
  $region1: #{greedy_ctc_marked_indices.1} parent=0
    #allocation2 [shape = 'u8[65536]{0}', space=vmem, size = 0x10000, scoped, tag = 'input window, operand 0, single buffered']
    #allocation3 [shape = 's32[1]{0}', space=sflag, size = 0x4, scoped, tag = 'scoped memory for greedy_ctc_marked_indices.1']
    %6 = vsyncpa [#allocation3], 0
    // Predicated region
    $region2: #{greedy_ctc_marked_indices.1} parent=1 // pred_check
      _
    $region3: #{greedy_ctc_marked_indices.1} parent=1 // pred_check_branch
      %8 = sbr.rel (0) target = $region5
    $region4: #{greedy_ctc_marked_indices.1} parent=1 // pred_region
      %s10 = ssub.s32 2048, 256
      %11 = vsyncadd [#allocation3], %s10
      %s12 = sshll.u32 [#allocation2], 4
      %s13 = int_to_ptr.vmem [resolvable:$true] %s12
      %18 = dma.hbm_to_vmem [thread:$0]  %s0, 256, %s13, [#allocation3], 128, 128, 8
    $region5: #{greedy_ctc_marked_indices.1} parent=1 // pred_fallthru
      _
    // Predicated region
    $region6: #{greedy_ctc_marked_indices.1} parent=1 // pred_check
      _
    $region7: #{greedy_ctc_marked_indices.1} parent=1 // pred_check_branch
      %20 = sbr.rel (0) target = $region9
    $region8: #{greedy_ctc_marked_indices.1} parent=1 // pred_region
      %21 = dma.done [#allocation3], 2048
    $region9: #{greedy_ctc_marked_indices.1} parent=1 // pred_fallthru
      _
    %v22 = vlaneseq
    %v23 = vshrl.u32 %v22, 7
    %v24 = vadd.s32 %v23, 8
    %v25 = vadd.s32 %v23, 16
    %v26 = vadd.s32 %v23, 24
    %v27 = vadd.s32 %v23, 32
    %v28 = vadd.s32 %v23, 40
    %v29 = vadd.s32 %v23, 48
    %v30 = vadd.s32 %v23, 56
    %v31 = vadd.s32 %v23, 64
    %v32 = vadd.s32 %v23, 72
    %v33 = vadd.s32 %v23, 80
    %v34 = vadd.s32 %v23, 88
    %v35 = vadd.s32 %v23, 96
    %v36 = vadd.s32 %v23, 104
    %v37 = vadd.s32 %v23, 112
    %v38 = vadd.s32 %v23, 120
    %v39 = vlaneseq
    %v40 = vand.u32 %v39, 127
    %v41 = vld [vmem:[#allocation2] sm:$0xff]
    %v42 = vld [vmem:[#allocation2 + $0x8] sm:$0xff]
    %v43 = vld [vmem:[#allocation2 + $0x10] sm:$0xff]
    %v44 = vld [vmem:[#allocation2 + $0x18] sm:$0xff]
    %v45 = vld [vmem:[#allocation2 + $0x20] sm:$0xff]
    %v46 = vld [vmem:[#allocation2 + $0x28] sm:$0xff]
    %v47 = vld [vmem:[#allocation2 + $0x30] sm:$0xff]
    %v48 = vld [vmem:[#allocation2 + $0x38] sm:$0xff]
    %v49 = vld [vmem:[#allocation2 + $0x40] sm:$0xff]
    %v50 = vld [vmem:[#allocation2 + $0x48] sm:$0xff]
    %v51 = vld [vmem:[#allocation2 + $0x50] sm:$0xff]
    %v52 = vld [vmem:[#allocation2 + $0x58] sm:$0xff]
    %v53 = vld [vmem:[#allocation2 + $0x60] sm:$0xff]
    %v54 = vld [vmem:[#allocation2 + $0x68] sm:$0xff]
    %v55 = vld [vmem:[#allocation2 + $0x70] sm:$0xff]
    %v56 = vld [vmem:[#allocation2 + $0x78] sm:$0xff]
    %vm57 = vcmp.lt.s32.totalorder %v40, 32
    %v58 = vsel %vm57, 1, 0
    %vm59 = vcmp.eq.s32.totalorder %v58, 1
    %v60 = vsel %vm59, %v41, -inf
    %v61 = vsel %vm59, %v42, -inf
    %v62 = vsel %vm59, %v43, -inf
    %v63 = vsel %vm59, %v44, -inf
    %v64 = vsel %vm59, %v45, -inf
    %v65 = vsel %vm59, %v46, -inf
    %v66 = vsel %vm59, %v47, -inf
    %v67 = vsel %vm59, %v48, -inf
    %v68 = vsel %vm59, %v49, -inf
    %v69 = vsel %vm59, %v50, -inf
    %v70 = vsel %vm59, %v51, -inf
    %v71 = vsel %vm59, %v52, -inf
    %v72 = vsel %vm59, %v53, -inf
    %v73 = vsel %vm59, %v54, -inf
    %v74 = vsel %vm59, %v55, -inf
    %v75 = vsel %vm59, %v56, -inf
    %76 = vxpose.xlu0.b32.start [1/16] %v60, 128
    %77 = vxpose.xlu0.b32.cont [2/16] %v61, 128
    %78 = vxpose.xlu0.b32.cont [3/16] %v62, 128
    %79 = vxpose.xlu0.b32.cont [4/16] %v63, 128
    %80 = vxpose.xlu0.b32.cont [5/16] %v64, 128
    %81 = vxpose.xlu0.b32.cont [6/16] %v65, 128
    %82 = vxpose.xlu0.b32.cont [7/16] %v66, 128
    %83 = vxpose.xlu0.b32.cont [8/16] %v67, 128
    %84 = vxpose.xlu0.b32.cont [9/16] %v68, 128
    %85 = vxpose.xlu0.b32.cont [10/16] %v69, 128
    %86 = vxpose.xlu0.b32.cont [11/16] %v70, 128
    %87 = vxpose.xlu0.b32.cont [12/16] %v71, 128
    %88 = vxpose.xlu0.b32.cont [13/16] %v72, 128
    %89 = vxpose.xlu0.b32.cont [14/16] %v73, 128
    %90 = vxpose.xlu0.b32.cont [15/16] %v74, 128
    %91 = vxpose.xlu0.b32.end [16/16] %v75, 128
    %v92 = vpop.trf.xlu0
    %v93 = vpop.trf.xlu0
    %v94 = vpop.trf.xlu0
    %v95 = vpop.trf.xlu0
    %v96 = vpop.trf.xlu0
    %v97 = vpop.trf.xlu0
    %v98 = vpop.trf.xlu0
    %v99 = vpop.trf.xlu0
    %v100 = vpop.trf.xlu0
    %v101 = vpop.trf.xlu0
    %v102 = vpop.trf.xlu0
    %v103 = vpop.trf.xlu0
    %v104 = vpop.trf.xlu0
    %v105 = vpop.trf.xlu0
    %v106 = vpop.trf.xlu0
    %v107 = vpop.trf.xlu0
    %v108 = vmax.f32 %v92, %v96
    %v109 = vmax.f32 %v93, %v97
    %v110 = vmax.f32 %v94, %v98
    %v111 = vmax.f32 %v95, %v99
    %v112 = vmax.f32 %v108, %v100
    %v113 = vmax.f32 %v109, %v101
    %v114 = vmax.f32 %v110, %v102
    %v115 = vmax.f32 %v111, %v103
    %v116 = vmax.f32 %v112, %v104
    %v117 = vmax.f32 %v113, %v105
    %v118 = vmax.f32 %v114, %v106
    %v119 = vmax.f32 %v115, %v107
    %v120 = vmax.f32 %v116, %v117
    %v121 = vmax.f32 %v118, %v119
    %v122 = vmax.f32 %v120, %v121
    %v123 = vrot.slane %v122, 4
    %v124 = vmax.f32 %v122, %v123
    %v125 = vrot.slane %v124, 2
    %v126 = vmax.f32 %v124, %v125
    %v127 = vrot.slane %v126, 1
    %v128 = vmax.f32 %v126, %v127
    %vm129 = vcmp.eq.f32.partialorder %v92, %v128
    %vm130 = vcmp.eq.f32.partialorder %v93, %v128
    %vm131 = vcmp.eq.f32.partialorder %v94, %v128
    %vm132 = vcmp.eq.f32.partialorder %v95, %v128
    %vm133 = vcmp.eq.f32.partialorder %v96, %v128
    %vm134 = vcmp.eq.f32.partialorder %v97, %v128
    %vm135 = vcmp.eq.f32.partialorder %v98, %v128
    %vm136 = vcmp.eq.f32.partialorder %v99, %v128
    %vm137 = vcmp.eq.f32.partialorder %v100, %v128
    %vm138 = vcmp.eq.f32.partialorder %v101, %v128
    %vm139 = vcmp.eq.f32.partialorder %v102, %v128
    %vm140 = vcmp.eq.f32.partialorder %v103, %v128
    %vm141 = vcmp.eq.f32.partialorder %v104, %v128
    %vm142 = vcmp.eq.f32.partialorder %v105, %v128
    %vm143 = vcmp.eq.f32.partialorder %v106, %v128
    %vm144 = vcmp.eq.f32.partialorder %v107, %v128
    %v145 = vsel %vm129, %v23, 32
    %v146 = vsel %vm130, %v24, 32
    %v147 = vsel %vm131, %v25, 32
    %v148 = vsel %vm132, %v26, 32
    %v149 = vsel %vm133, %v27, 32
    %v150 = vsel %vm134, %v28, 32
    %v151 = vsel %vm135, %v29, 32
    %v152 = vsel %vm136, %v30, 32
    %v153 = vsel %vm137, %v31, 32
    %v154 = vsel %vm138, %v32, 32
    %v155 = vsel %vm139, %v33, 32
    %v156 = vsel %vm140, %v34, 32
    %v157 = vsel %vm141, %v35, 32
    %v158 = vsel %vm142, %v36, 32
    %v159 = vsel %vm143, %v37, 32
    %v160 = vsel %vm144, %v38, 32
    %vm161 = vcmp.lt.s32.totalorder %v145, %v149
    %v162 = vsel %vm161, %v145, %v149
    %vm163 = vcmp.lt.s32.totalorder %v146, %v150
    %v164 = vsel %vm163, %v146, %v150
    %vm165 = vcmp.lt.s32.totalorder %v147, %v151
    %v166 = vsel %vm165, %v147, %v151
    %vm167 = vcmp.lt.s32.totalorder %v148, %v152
    %v168 = vsel %vm167, %v148, %v152
    %vm169 = vcmp.lt.s32.totalorder %v162, %v153
    %v170 = vsel %vm169, %v162, %v153
    %vm171 = vcmp.lt.s32.totalorder %v164, %v154
    %v172 = vsel %vm171, %v164, %v154
    %vm173 = vcmp.lt.s32.totalorder %v166, %v155
    %v174 = vsel %vm173, %v166, %v155
    %vm175 = vcmp.lt.s32.totalorder %v168, %v156
    %v176 = vsel %vm175, %v168, %v156
    %vm177 = vcmp.lt.s32.totalorder %v170, %v157
    %v178 = vsel %vm177, %v170, %v157
    %vm179 = vcmp.lt.s32.totalorder %v172, %v158
    %v180 = vsel %vm179, %v172, %v158
    %vm181 = vcmp.lt.s32.totalorder %v174, %v159
    %v182 = vsel %vm181, %v174, %v159
    %vm183 = vcmp.lt.s32.totalorder %v176, %v160
    %v184 = vsel %vm183, %v176, %v160
    %vm185 = vcmp.lt.s32.totalorder %v178, %v180
    %v186 = vsel %vm185, %v178, %v180
    %vm187 = vcmp.lt.s32.totalorder %v182, %v184
    %v188 = vsel %vm187, %v182, %v184
    %vm189 = vcmp.lt.s32.totalorder %v186, %v188
    %v190 = vsel %vm189, %v186, %v188
    %v191 = vrot.slane %v190, 4
    %vm192 = vcmp.lt.s32.totalorder %v190, %v191
    %v193 = vsel %vm192, %v190, %v191
    %v194 = vrot.slane %v193, 2
    %vm195 = vcmp.lt.s32.totalorder %v193, %v194
    %v196 = vsel %vm195, %v193, %v194
    %v197 = vrot.slane %v196, 1
    %vm198 = vcmp.lt.s32.totalorder %v196, %v197
    %v199 = vsel %vm198, %v196, %v197
    %200 = vst [vmem:[%s1] sm:$0x1] %v199
    // Predicated region
    $region10: #{greedy_ctc_marked_indices.1} parent=1 // pred_check
      _
    $region11: #{greedy_ctc_marked_indices.1} parent=1 // pred_check_branch
      %202 = sbr.rel (0) target = $region13
    $region12: #{greedy_ctc_marked_indices.1} parent=1 // pred_region
      _
    $region13: #{greedy_ctc_marked_indices.1} parent=1 // pred_fallthru
      _
    // Predicated region
    $region14: #{greedy_ctc_marked_indices.1} parent=1 // pred_check
      _
    $region15: #{greedy_ctc_marked_indices.1} parent=1 // pred_check_branch
      %204 = sbr.rel (0) target = $region17
    $region16: #{greedy_ctc_marked_indices.1} parent=1 // pred_region
      _
    $region17: #{greedy_ctc_marked_indices.1} parent=1 // pred_fallthru
      _
    %205 = vsyncpa [#allocation3], 1

</llo_original>
